<compile_context>
chip_gen: v7x
topology: tpu7x:2x2x1
jax: 0.10.0
libtpu: 0.0.40
codegen_flags: <defaults>
</compile_context>

<pallas_src>
import functools
import math

import jax
import jax.numpy as jnp
from jax.experimental import pallas as pl
from jax.experimental.pallas import tpu as pltpu

NEG_SLOPE = 0.2  # LeakyReLU slope used by Downsampler / Upsampler_SE


# ----------------------------------------------------------------------------
# Pallas kernels.  All kernels operate on one texture tile per grid step:
#   p_ref : (1, K, NHW)   im2col patches for this tile (lanes = batch*spatial)
#   w_ref : (1, C_out, K) per-tile conv weight
#   b_ref : (1, C_out, 1) per-tile conv bias
# ----------------------------------------------------------------------------

def _conv_lrelu_kernel(p_ref, w_ref, b_ref, o_ref):
    y = jnp.dot(w_ref[0], p_ref[0], preferred_element_type=jnp.float32) + b_ref[0]
    o_ref[0] = jnp.where(y >= 0.0, y, NEG_SLOPE * y)


def _conv_linear_kernel(p_ref, w_ref, b_ref, o_ref):
    o_ref[0] = jnp.dot(w_ref[0], p_ref[0], preferred_element_type=jnp.float32) + b_ref[0]


def _sigmoid(x):
    # 1 / (1 + exp(-x)) with the reciprocal on the EUP slot.
    return pl.reciprocal(1.0 + jnp.exp(-x), approx=True)


def _gru_gates_kernel(p_ref, wz_ref, bz_ref, wr_ref, br_ref, h_ref, z_ref, rh_ref):
    """Fused: conv over [x, h] -> update gate z, reset gate r, and r*h."""
    p = p_ref[0]
    z = _sigmoid(jnp.dot(wz_ref[0], p, preferred_element_type=jnp.float32) + bz_ref[0])
    r = _sigmoid(jnp.dot(wr_ref[0], p, preferred_element_type=jnp.float32) + br_ref[0])
    z_ref[0] = z
    rh_ref[0] = r * h_ref[0]


def _gru_update_kernel(p_ref, wc_ref, bc_ref, h_ref, z_ref, o_ref):
    """Fused: conv over [x, r*h] -> candidate, then h' = (1-z)*h + z*tanh(.)"""
    cand = jnp.tanh(
        jnp.dot(wc_ref[0], p_ref[0], preferred_element_type=jnp.float32) + bc_ref[0])
    z = z_ref[0]
    o_ref[0] = (1.0 - z) * h_ref[0] + z * cand


def _masked_l1_kernel(tex_ref, real_ref, com_ref, tgt_ref, o_ref):
    """sum_i mean(| (common & tgt_i) * texture - (common & tgt_i) * real |)."""
    tex = tex_ref[...]                      # (3, HW)
    real = real_ref[...]                    # (3, HW)
    com = com_ref[...]                      # (1, HW)
    tgt = tgt_ref[...]                      # (S_tgt, HW)
    n = float(tex_ref.shape[0] * tex_ref.shape[1])
    acc = jnp.zeros((1, 1), jnp.float32)
    for i in range(tgt_ref.shape[0]):       # static unroll over target masks
        area = com * tgt[i:i + 1, :]        # (1, HW), binary
        diff = jnp.abs(area * tex - area * real)            # (3, HW)
        acc = acc + jnp.sum(jnp.sum(diff, axis=1, keepdims=True),
                            axis=0, keepdims=True)
    o_ref[...] = acc * (1.0 / n)


# ----------------------------------------------------------------------------
# JAX glue: im2col, bilinear upsample (align_corners), tile assembly.
# ----------------------------------------------------------------------------

def _im2col(x, kh, kw, stride, pad):
    """(N, C, H, W) -> (N, C*kh*kw, Ho*Wo), row order (c, kh, kw)."""
    N, C, H, W = x.shape
    xp = jnp.pad(x, ((0, 0), (0, 0), (pad, pad), (pad, pad)))
    Ho = (H + 2 * pad - kh) // stride + 1
    Wo = (W + 2 * pad - kw) // stride + 1
    cols = []
    for i in range(kh):
        for j in range(kw):
            cols.append(xp[:, :, i:i + stride * (Ho - 1) + 1:stride,
                               j:j + stride * (Wo - 1) + 1:stride])
    p = jnp.stack(cols, axis=2)                       # (N, C, kh*kw, Ho, Wo)
    return p.reshape(N, C * kh * kw, Ho * Wo), Ho, Wo


def upsample_bilinear(x, out_h, out_w):
    """nn.UpsamplingBilinear2d (align_corners=True) on (N, C, H, W)."""
    N, C, H, W = x.shape

    def coords(out_s, in_s):
        if in_s == 1 or out_s == 1:
            return jnp.zeros((out_s,), jnp.float32)
        return jnp.arange(out_s, dtype=jnp.float32) * ((in_s - 1) / (out_s - 1))

    ys, xs = coords(out_h, H), coords(out_w, W)
    y0 = jnp.floor(ys).astype(jnp.int32)
    x0 = jnp.floor(xs).astype(jnp.int32)
    y1 = jnp.minimum(y0 + 1, H - 1)
    x1 = jnp.minimum(x0 + 1, W - 1)
    wy = (ys - y0.astype(jnp.float32))[:, None]
    wx = (xs - x0.astype(jnp.float32))[None, :]

    def g(yi, xi):
        return x[:, :, yi, :][:, :, :, xi]

    top = g(y0, x0) * (1.0 - wx) + g(y0, x1) * wx
    bot = g(y1, x0) * (1.0 - wx) + g(y1, x1) * wx
    return top * (1.0 - wy) + bot * wy


def assemble_texture(tiles, rows, cols):
    """(rows*cols, N, C, th, tw) -> (N, C, rows*th, cols*tw), tile t = i*cols+j."""
    T, N, C, th, tw = tiles.shape
    x = tiles.reshape(rows, cols, N, C, th, tw)
    x = x.transpose(2, 3, 0, 4, 1, 5)
    return x.reshape(N, C, rows * th, cols * tw)


# ----------------------------------------------------------------------------
# Pallas wrappers (one pallas_call covers all 24 tiles via grid=(T,)).
# ----------------------------------------------------------------------------

@functools.partial(jax.jit, static_argnames=("stride", "padding", "act"))
def conv2d_tiled(x, w, b, *, stride, padding, act):
    """Per-tile Conv2d + bias + (LeakyReLU | identity).

    x: (T, N, C_in, H, W)   w: (T, C_out, C_in, KH, KW)   b: (T, C_out)
    returns (T, N, C_out, Ho, Wo)
    """
    T, N, C, H, W = x.shape
    C_out, _, KH, KW = w.shape[1:]
    p, Ho, Wo = _im2col(x.reshape(T * N, C, H, W), KH, KW, stride, padding)
    K = C * KH * KW
    HWo = Ho * Wo
    p = p.reshape(T, N, K, HWo).transpose(0, 2, 1, 3).reshape(T, K, N * HWo)
    w2 = w.reshape(T, C_out, K)
    b2 = b.reshape(T, C_out, 1)
    kern = _conv_lrelu_kernel if act == "lrelu" else _conv_linear_kernel
    y = pl.pallas_call(
        kern,
        out_shape=jax.ShapeDtypeStruct((T, C_out, N * HWo), jnp.float32),
        grid=(T,),
        in_specs=[
            pl.BlockSpec((1, K, N * HWo), lambda t: (t, 0, 0)),
            pl.BlockSpec((1, C_out, K), lambda t: (t, 0, 0)),
            pl.BlockSpec((1, C_out, 1), lambda t: (t, 0, 0)),
        ],
        out_specs=pl.BlockSpec((1, C_out, N * HWo), lambda t: (t, 0, 0)),
        compiler_params=pltpu.CompilerParams(dimension_semantics=("parallel",)),
    )(p, w2, b2)
    return y.reshape(T, C_out, N, Ho, Wo).transpose(0, 2, 1, 3, 4)


@jax.jit
def conv_gru_step_tiled(x_t, h, wz, bz, wr, br, wc, bc):
    """One ConvGRU time step for all tiles at once.

    x_t, h: (T, N, C, H, W); weights: (T, C, 2C, 3, 3); biases: (T, C).
    """
    T, N, C, H, W = x_t.shape
    HW = H * W
    K2 = 2 * C * 9

    def to_patches(inp):
        p, _, _ = _im2col(inp.reshape(T * N, 2 * C, H, W), 3, 3, 1, 1)
        return p.reshape(T, N, K2, HW).transpose(0, 2, 1, 3).reshape(T, K2, N * HW)

    h2 = h.transpose(0, 2, 1, 3, 4).reshape(T, C, N * HW)
    wz2, wr2, wc2 = (a.reshape(T, C, K2) for a in (wz, wr, wc))
    bz2, br2, bc2 = (a.reshape(T, C, 1) for a in (bz, br, bc))

    mat_spec = pl.BlockSpec((1, K2, N * HW), lambda t: (t, 0, 0))
    w_spec = pl.BlockSpec((1, C, K2), lambda t: (t, 0, 0))
    b_spec = pl.BlockSpec((1, C, 1), lambda t: (t, 0, 0))
    v_spec = pl.BlockSpec((1, C, N * HW), lambda t: (t, 0, 0))
    cparams = pltpu.CompilerParams(dimension_semantics=("parallel",))

    # Gates: conv over [x, h] -> z, r*h (fused into one kernel).
    p1 = to_patches(jnp.concatenate([x_t, h], axis=2))
    z2, rh2 = pl.pallas_call(
        _gru_gates_kernel,
        out_shape=(jax.ShapeDtypeStruct((T, C, N * HW), jnp.float32),
                   jax.ShapeDtypeStruct((T, C, N * HW), jnp.float32)),
        grid=(T,),
        in_specs=[mat_spec, w_spec, b_spec, w_spec, b_spec, v_spec],
        out_specs=(v_spec, v_spec),
        compiler_params=cparams,
    )(p1, wz2, bz2, wr2, br2, h2)

    # Candidate + state update: conv over [x, r*h], h' = (1-z)*h + z*tanh(.).
    rh = rh2.reshape(T, C, N, H, W).transpose(0, 2, 1, 3, 4)
    p2 = to_patches(jnp.concatenate([x_t, rh], axis=2))
    hn2 = pl.pallas_call(
        _gru_update_kernel,
        out_shape=jax.ShapeDtypeStruct((T, C, N * HW), jnp.float32),
        grid=(T,),
        in_specs=[mat_spec, w_spec, b_spec, v_spec, v_spec],
        out_specs=v_spec,
        compiler_params=cparams,
    )(p2, wc2, bc2, h2, z2)
    return hn2.reshape(T, C, N, H, W).transpose(0, 2, 1, 3, 4)


def conv_gru_tiled(x_seq, gru_params):
    """x_seq: (T, S, N, C, H, W) -> last hidden state (T, N, C, H, W)."""
    T, S, N, C, H, W = x_seq.shape
    h = jnp.zeros((T, N, C, H, W), jnp.float32)
    for s in range(S):
        h = conv_gru_step_tiled(x_seq[:, s], h, *gru_params)
    return h


def masked_l1_loss(texture_img, common_f, tgt_masks_f, real_img):
    """Pallas kernel for the masked L1 loss accumulation (batch must be 1)."""
    _, C3, H, W = texture_img.shape
    HW = H * W
    tex2 = texture_img[0].reshape(C3, HW)
    real2 = real_img[0].reshape(C3, HW)
    com2 = common_f[0].reshape(1, HW)
    tgt2 = tgt_masks_f[0].reshape(-1, HW)
    S_tgt = tgt2.shape[0]
    loss = pl.pallas_call(
        _masked_l1_kernel,
        out_shape=jax.ShapeDtypeStruct((1, 1), jnp.float32),
        grid=(1,),
        in_specs=[
            pl.BlockSpec((C3, HW), lambda i: (0, 0)),
            pl.BlockSpec((C3, HW), lambda i: (0, 0)),
            pl.BlockSpec((1, HW), lambda i: (0, 0)),
            pl.BlockSpec((S_tgt, HW), lambda i: (0, 0)),
        ],
        out_specs=pl.BlockSpec((1, 1), lambda i: (0, 0)),
    )(tex2, real2, com2, tgt2)
    return loss[0, 0]


# ----------------------------------------------------------------------------
# Full Accumulate_GRU forward (Pallas path).
# ----------------------------------------------------------------------------

ENC_STRIDES = [1, 2, 1, 2, 1, 2, 1, 2, 1]
ENC_PADS = [2, 1, 1, 1, 1, 1, 1, 1, 1]


def upsampler_se_tiled(x, enc_x, w, b, out_size):
    T, N, C, H, W = x.shape
    xu = upsample_bilinear(x.reshape(T * N, C, H, W), out_size, out_size)
    xu = xu.reshape(T, N, C, out_size, out_size)
    xc = jnp.concatenate([xu, enc_x], axis=2)
    return conv2d_tiled(xc, w, b, stride=1, padding=1, act="lrelu")


def accumulate_gru_forward(x_in, src_mask, tgt_mask, tgt_im, params,
                           dec_sizes, grid_rows, grid_cols):
    """x_in: (T, S, B, 3, TILE, TILE); masks/images as in the torch module."""
    T, S, B = x_in.shape[:3]

    # ---- 24 Downsampler_GRU encoders (all tiles fused per layer) ----
    x = x_in.reshape(T, S * B, *x_in.shape[3:])       # == torch.cat(x, dim=0)
    acts = []
    for l in range(9):
        x = conv2d_tiled(x, params["enc_w"][l], params["enc_b"][l],
                         stride=ENC_STRIDES[l], padding=ENC_PADS[l], act="lrelu")
        acts.append(x)
    skips = [acts[0], acts[2], acts[4], acts[6], acts[8]]   # x1, x3, x5, x7, x9

    hs = []
    for k, xk in enumerate(skips):
        x_seq = xk.reshape(T, S, B, *xk.shape[2:])
        hs.append(conv_gru_tiled(x_seq, params["gru"][k]))

    # ---- 24 Upsampler_stack_noEmbed decoders ----
    x = hs[4]
    dec_skips = [hs[3], hs[2], hs[1], hs[0]]
    for d in range(4):
        x = upsampler_se_tiled(x, dec_skips[d],
                               params["dec_w"][d], params["dec_b"][d], dec_sizes[d])
    tex = conv2d_tiled(x, params["final_w"], params["final_b"],
                       stride=1, padding=1, act="linear")   # (T, B, 3, TILE, TILE)

    # ---- texture canvas + masked L1 loss ----
    texture_image = assemble_texture(tex, grid_rows, grid_cols)
    src_f = src_mask.astype(jnp.float32)
    common = jnp.max(src_f[:, :, 0], axis=1)                 # OR of binary masks
    tgt_f = tgt_mask[:, :, 0].astype(jnp.float32)
    real = tgt_im[:, 0].astype(jnp.float32)
    loss = masked_l1_loss(texture_image, common, tgt_f, real)
    return texture_image, loss


# ----------------------------------------------------------------------------
# Parameter init (stacked over the 24 tiles).
# ----------------------------------------------------------------------------

def _conv_init(key, t, c_out, c_in, k):
    k1, k2 = jax.random.split(key)
    fan_in = c_in * k * k
    bound = math.sqrt(6.0 / fan_in)
    w = jax.random.uniform(k1, (t, c_out, c_in, k, k), jnp.float32, -bound, bound)
    b = jax.random.uniform(k2, (t, c_out), jnp.float32, -bound, bound)
    return w, b


def init_params(key, T, input_nc, enc_nc, dec_nc):
    enc_defs = [(input_nc, enc_nc[0], 5)] + \
               [(enc_nc[i], enc_nc[i + 1], 3) for i in range(8)]
    enc_w, enc_b = [], []
    for ci, co, k in enc_defs:
        key, sub = jax.random.split(key)
        w, b = _conv_init(sub, T, co, ci, k)
        enc_w.append(w)
        enc_b.append(b)
    gru = []
    for C in (enc_nc[0], enc_nc[2], enc_nc[4], enc_nc[6], enc_nc[8]):
        key, kz, kr, kc = jax.random.split(key, 4)
        wz, bz = _conv_init(kz, T, C, 2 * C, 3)
        wr, br = _conv_init(kr, T, C, 2 * C, 3)
        wc, bc = _conv_init(kc, T, C, 2 * C, 3)
        gru.append((wz, bz, wr, br, wc, bc))
    dec_defs = [(enc_nc[8] + enc_nc[6], dec_nc[0]), (enc_nc[4] + dec_nc[0], dec_nc[1]),
                (enc_nc[2] + dec_nc[1], dec_nc[2]), (enc_nc[0] + dec_nc[2], dec_nc[3])]
    dec_w, dec_b = [], []
    for ci, co in dec_defs:
        key, sub = jax.random.split(key)
        w, b = _conv_init(sub, T, co, ci, 3)
        dec_w.append(w)
        dec_b.append(b)
    key, sub = jax.random.split(key)
    fw, fb = _conv_init(sub, T, 3, dec_nc[3], 3)
    return dict(enc_w=enc_w, enc_b=enc_b, gru=gru,
                dec_w=dec_w, dec_b=dec_b, final_w=fw, final_b=fb)


# ----------------------------------------------------------------------------
# Pure-JAX reference (XLA convs) for a correctness check.
# ----------------------------------------------------------------------------

def ref_conv(x, w, b, stride, padding, act="lrelu"):
    y = jax.lax.conv_general_dilated(
        x, w, (stride, stride), [(padding, padding), (padding, padding)],
        dimension_numbers=("NCHW", "OIHW", "NCHW"),
        precision=jax.lax.Precision.HIGHEST)
    y = y + b[None, :, None, None]
    return jnp.where(y >= 0.0, y, NEG_SLOPE * y) if act == "lrelu" else y


def ref_gru(x_seq, wz, bz, wr, br, wc, bc):
    S, B, C, H, W = x_seq.shape
    h = jnp.zeros((B, C, H, W), jnp.float32)
    for s in range(S):
        xt = x_seq[s]
        comb = jnp.concatenate([xt, h], axis=1)
        z = jax.nn.sigmoid(ref_conv(comb, wz, bz, 1, 1, act="linear"))
        r = jax.nn.sigmoid(ref_conv(comb, wr, br, 1, 1, act="linear"))
        comb2 = jnp.concatenate([xt, r * h], axis=1)
        cand = jnp.tanh(ref_conv(comb2, wc, bc, 1, 1, act="linear"))
        h = (1.0 - z) * h + z * cand
    return h


def ref_accumulate_gru(x_in, src_mask, tgt_mask, tgt_im, params,
                       dec_sizes, grid_rows, grid_cols):
    T, S, B = x_in.shape[:3]
    tex_tiles = []
    for t in range(T):
        x = x_in[t].reshape(S * B, *x_in.shape[3:])
        acts = []
        for l in range(9):
            x = ref_conv(x, params["enc_w"][l][t], params["enc_b"][l][t],
                         ENC_STRIDES[l], ENC_PADS[l], act="lrelu")
            acts.append(x)
        skips = [acts[0], acts[2], acts[4], acts[6], acts[8]]
        hs = []
        for k, xk in enumerate(skips):
            x_seq = xk.reshape(S, B, *xk.shape[1:])
            wz, bz, wr, br, wc, bc = params["gru"][k]
            hs.append(ref_gru(x_seq, wz[t], bz[t], wr[t], br[t], wc[t], bc[t]))
        x = hs[4]
        dec_skips = [hs[3], hs[2], hs[1], hs[0]]
        for d in range(4):
            xu = upsample_bilinear(x, dec_sizes[d], dec_sizes[d])
            xc = jnp.concatenate([xu, dec_skips[d]], axis=1)
            x = ref_conv(xc, params["dec_w"][d][t], params["dec_b"][d][t], 1, 1, "lrelu")
        tex_tiles.append(ref_conv(x, params["final_w"][t], params["final_b"][t],
                                  1, 1, act="linear"))
    tex = jnp.stack(tex_tiles, axis=0)
    texture_image = assemble_texture(tex, grid_rows, grid_cols)
    src_f = src_mask.astype(jnp.float32)
    common = jnp.max(src_f[:, :, 0], axis=1)
    loss = 0.0
    for i in range(tgt_mask.shape[1]):
        area = common * tgt_mask[:, i, 0].astype(jnp.float32)
        gen = area[:, None] * texture_image
        real = area[:, None] * tgt_im[:, 0].astype(jnp.float32)
        loss = loss + jnp.mean(jnp.abs(gen - real))
    return texture_image, loss


# ----------------------------------------------------------------------------

if __name__ == "__main__":
    T_TILES = 24                  # 4 x 6 texture tiles, as in Accumulate_GRU.forward
    GRID_R, GRID_C = 4, 6
    SEQ = 2                       # number of source frames per tile
    B = 1                         # batch (torch loss broadcasting requires B == 1)
    TILE = 16                     # scaled-down tile size (original: 200)
    IMG_H, IMG_W = GRID_R * TILE, GRID_C * TILE
    ENC_NC = [12, 24, 24, 24, 24, 48, 48, 96, 96]
    DEC_NC = [48, 24, 12, 6]
    DEC_SIZES = [TILE // 8, TILE // 4, TILE // 2, TILE]    # (25,50,100,200) scaled

    key = jax.random.PRNGKey(0)
    key, kx, km1, km2, kim = jax.random.split(key, 5)
    x_in = jax.random.normal(kx, (T_TILES, SEQ, B, 3, TILE, TILE), jnp.float32)
    src_texture_mask = (jax.random.uniform(km1, (B, 2, 1, IMG_H, IMG_W)) > 0.4
                        ).astype(jnp.uint8)
    tgt_texture_mask = (jax.random.uniform(km2, (B, 2, 1, IMG_H, IMG_W)) > 0.4
                        ).astype(jnp.uint8)
    tgt_texture_im = jax.random.normal(kim, (B, 1, 3, IMG_H, IMG_W), jnp.float32)

    params = init_params(key, T_TILES, 3, ENC_NC, DEC_NC)

    tex_img, loss = accumulate_gru_forward(
        x_in, src_texture_mask, tgt_texture_mask, tgt_texture_im, params,
        DEC_SIZES, GRID_R, GRID_C)
    tex_img, loss = jax.block_until_ready((tex_img, loss))

    assert tex_img.shape == (B, 3, IMG_H, IMG_W)
    assert bool(jnp.all(jnp.isfinite(tex_img))) and bool(jnp.isfinite(loss))

    ref_img, ref_loss = ref_accumulate_gru(
        x_in, src_texture_mask, tgt_texture_mask, tgt_texture_im, params,
        DEC_SIZES, GRID_R, GRID_C)
    ref_img, ref_loss = jax.block_until_ready((ref_img, ref_loss))

    assert bool(jnp.allclose(tex_img, ref_img, atol=2e-2, rtol=2e-2)), float(
        jnp.max(jnp.abs(tex_img - ref_img)))
    assert bool(jnp.allclose(loss, ref_loss, atol=2e-2, rtol=2e-2)), (
        float(loss), float(ref_loss))

    print("KERNEL_OK")
</pallas_src>

<mosaic_0001>
module attributes {stable_mosaic.version = 11 : i64} {
  func.func @_conv_lrelu_kernel(%arg0: i32, %arg1: memref<1x75x512xf32, #tpu.memory_space<vmem>>, %arg2: memref<1x12x75xf32, #tpu.memory_space<vmem>>, %arg3: memref<1x12x1xf32, #tpu.memory_space<vmem>>, %arg4: memref<1x12x512xf32, #tpu.memory_space<vmem>>) attributes {dimension_semantics = [#tpu.dimension_semantics<parallel>], iteration_bounds = array<i64: 24>, scalar_prefetch = 0 : i64, scratch_operands = 0 : i64, tpu.core_type = #tpu.core_type<tc>, window_params = [{transform_indices = @transform_0, window_bounds = array<i64: 1, 75, 512>}, {transform_indices = @transform_1, window_bounds = array<i64: 1, 12, 75>}, {transform_indices = @transform_2, window_bounds = array<i64: 1, 12, 1>}, {transform_indices = @transform_3, window_bounds = array<i64: 1, 12, 512>}]} {
    %c0 = arith.constant 0 : index
    %c0_0 = arith.constant 0 : index
    %c0_1 = arith.constant 0 : index
    %0 = vector.load %arg2[%c0, %c0_0, %c0_1] : memref<1x12x75xf32, #tpu.memory_space<vmem>>, vector<1x12x75xf32>
    %1 = vector.shape_cast %0 : vector<1x12x75xf32> to vector<12x75xf32>
    %c0_2 = arith.constant 0 : index
    %c0_3 = arith.constant 0 : index
    %c0_4 = arith.constant 0 : index
    %2 = vector.load %arg1[%c0_2, %c0_3, %c0_4] : memref<1x75x512xf32, #tpu.memory_space<vmem>>, vector<1x75x512xf32>
    %3 = vector.shape_cast %2 : vector<1x75x512xf32> to vector<75x512xf32>
    %cst = arith.constant dense<0.000000e+00> : vector<12x512xf32>
    %4 = tpu.matmul %1, %3, %cst {dimension_numbers = #tpu.dot_dimension_numbers<[1], [0], [0], [1], [0, 0, 1, 1], [], []>} : vector<12x75xf32>, vector<75x512xf32>, vector<12x512xf32> -> vector<12x512xf32>
    %c0_5 = arith.constant 0 : index
    %c0_6 = arith.constant 0 : index
    %c0_7 = arith.constant 0 : index
    %5 = vector.load %arg3[%c0_5, %c0_6, %c0_7] : memref<1x12x1xf32, #tpu.memory_space<vmem>>, vector<1x12x1xf32>
    %6 = vector.shape_cast %5 : vector<1x12x1xf32> to vector<12x1xf32>
    %7 = vector.broadcast %6 : vector<12x1xf32> to vector<12x512xf32>
    %8 = arith.addf %4, %7 : vector<12x512xf32>
    %cst_8 = arith.constant 0.000000e+00 : f32
    %9 = vector.broadcast %cst_8 : f32 to vector<12x512xf32>
    %10 = arith.cmpf oge, %8, %9 : vector<12x512xf32>
    %cst_9 = arith.constant 2.000000e-01 : f32
    %11 = vector.broadcast %cst_9 : f32 to vector<12x512xf32>
    %12 = arith.mulf %11, %8 : vector<12x512xf32>
    %13 = arith.select %10, %8, %12 : vector<12x512xi1>, vector<12x512xf32>
    %c0_10 = arith.constant 0 : index
    %c0_11 = arith.constant 0 : index
    %c0_12 = arith.constant 0 : index
    %14 = vector.load %arg4[%c0_10, %c0_11, %c0_12] : memref<1x12x512xf32, #tpu.memory_space<vmem>>, vector<1x12x512xf32>
    %15 = vector.shape_cast %14 : vector<1x12x512xf32> to vector<12x512xf32>
    %16 = vector.shape_cast %13 : vector<12x512xf32> to vector<1x12x512xf32>
    tpu.vector_store %arg4[%c0_10, %c0_11, %c0_12], %16 {strides = array<i32>} : memref<1x12x512xf32, #tpu.memory_space<vmem>>, vector<1x12x512xf32>,
    return
  }
  func.func @transform_0(%arg0: i32) -> (i32, i32, i32) {
    %c0_i32 = arith.constant 0 : i32
    %c0_i32_0 = arith.constant 0 : i32
    %c0_i32_1 = arith.constant 0 : i32
    return %arg0, %c0_i32, %c0_i32_0 : i32, i32, i32
  }
  func.func @transform_1(%arg0: i32) -> (i32, i32, i32) {
    %c0_i32 = arith.constant 0 : i32
    %c0_i32_0 = arith.constant 0 : i32
    %c0_i32_1 = arith.constant 0 : i32
    return %arg0, %c0_i32, %c0_i32_0 : i32, i32, i32
  }
  func.func @transform_2(%arg0: i32) -> (i32, i32, i32) {
    %c0_i32 = arith.constant 0 : i32
    %c0_i32_0 = arith.constant 0 : i32
    %c0_i32_1 = arith.constant 0 : i32
    return %arg0, %c0_i32, %c0_i32_0 : i32, i32, i32
  }
  func.func @transform_3(%arg0: i32) -> (i32, i32, i32) {
    %c0_i32 = arith.constant 0 : i32
    %c0_i32_0 = arith.constant 0 : i32
    %c0_i32_1 = arith.constant 0 : i32
    return %arg0, %c0_i32, %c0_i32_0 : i32, i32, i32
  }
}

</mosaic_0001>

<llo_original>
// kernel: conv2d_tiled.1
$region0: #{conv2d_tiled.1}
  #allocation0 [shape = 'u32[]', space=smem, size = 0x4, offset = 0x4, fixed_abs, tag = 'smem constant byte address 0x4 - core index']
  #allocation1 [shape = 'u32[144,128]{1,0:T(1,128)}', space=vmem, size = 0x12000, scoped, tag = 'internal scratch']
  %s0 = inlined_call_operand.vmem [shape: f32[24,75,512], index: 0, kind: input, shape index: {}]
  %s1 = inlined_call_operand.vmem [shape: f32[24,12,75], index: 1, kind: input, shape index: {}]
  %s2 = inlined_call_operand.vmem [shape: f32[24,12,1], index: 2, kind: input, shape index: {}]
  %s3 = inlined_call_operand.vmem [shape: f32[24,12,512], index: 3, kind: output, shape index: {}]
  %s4 = sld [smem:[#allocation0]]
  $region45: #{conv2d_tiled.1} parent=0
    _
  %s6 = ssub.s32 1, %s4
  %s7 = scalar_select 0, %s6, %s4
  loop: start=0, step=1, limit=26
  $region2: #{conv2d_tiled.1} parent=0 // loop_pre_header
    _
  $region3: #{conv2d_tiled.1} parent=0 // loop_header
    %s9 = sphi 0, %s13
    %p10 = scmp.ge.s32.totalorder %s9, 26
    %s19 = sphi 0, %s21
    %s22 = sphi 0, %s19
    %s23 = sphi 0, %s22
    %s39 = sphi 0, %s23
    %s45 = sphi 0, %s47
    %s48 = sphi 0, %s45
    %s49 = sphi 0, %s48
    %s65 = sphi 0, %s49
    %s71 = sphi 0, %s73
    %s74 = sphi 0, %s71
    %s75 = sphi 0, %s74
    %s91 = sphi 0, %s75
    %s97 = sphi 0, %s99
    %s100 = sphi 0, %s97
    %s101 = sphi 0, %s100
    %s117 = sphi 0, %s101
  $region4: #{conv2d_tiled.1} parent=0 // loop_header_branch
    %12 = sbr.rel (%p10) target = $region8
  $region5: #{conv2d_tiled.1} parent=0 // loop_body
    %s14 = ssub.s32 %s9, 1
    %s15 = ssub.s32 %s9, 2
    %s16 = sadd.s32 %s9, 1
    %s17 = ssub.s32 %s9, %s16
    %p18 = scmp.eq.s32.totalorder %s17, 0
    %s20 = sadd.s32 %s19, 1
    %s21 = scalar_select %p18, %s19, %s20
    %p24 = pneg %p18
    %p25 = scmp.eq.s32.totalorder %s9, 23
    %p26 = por %p24, %p25
    %p27 = scmp.ne.s32.totalorder %s19, %s22
    %p28 = scmp.eq.s32.totalorder %s9, 0
    %p29 = por %p27, %p28
    %p30 = scmp.ne.s32.totalorder %s19, %s22
    %p31 = scmp.eq.s32.totalorder %s14, 23
    %p32 = por %p30, %p31
    %p33 = scmp.ne.s32.totalorder %s22, %s23
    %p34 = scmp.eq.s32.totalorder %s14, 0
    %p35 = por %p33, %p34
    %p36 = scmp.ne.s32.totalorder %s22, %s23
    %p37 = scmp.eq.s32.totalorder %s15, 23
    %p38 = por %p36, %p37
    %p40 = scmp.ne.s32.totalorder %s23, %s39
    %p41 = scmp.eq.s32.totalorder %s15, 0
    %p42 = por %p40, %p41
    %s43 = ssub.s32 %s9, %s16
    %p44 = scmp.eq.s32.totalorder %s43, 0
    %s46 = sadd.s32 %s45, 1
    %s47 = scalar_select %p44, %s45, %s46
    %p50 = pneg %p44
    %p51 = scmp.eq.s32.totalorder %s9, 23
    %p52 = por %p50, %p51
    %p53 = scmp.ne.s32.totalorder %s45, %s48
    %p54 = scmp.eq.s32.totalorder %s9, 0
    %p55 = por %p53, %p54
    %p56 = scmp.ne.s32.totalorder %s45, %s48
    %p57 = scmp.eq.s32.totalorder %s14, 23
    %p58 = por %p56, %p57
    %p59 = scmp.ne.s32.totalorder %s48, %s49
    %p60 = scmp.eq.s32.totalorder %s14, 0
    %p61 = por %p59, %p60
    %p62 = scmp.ne.s32.totalorder %s48, %s49
    %p63 = scmp.eq.s32.totalorder %s15, 23
    %p64 = por %p62, %p63
    %p66 = scmp.ne.s32.totalorder %s49, %s65
    %p67 = scmp.eq.s32.totalorder %s15, 0
    %p68 = por %p66, %p67
    %s69 = ssub.s32 %s9, %s16
    %p70 = scmp.eq.s32.totalorder %s69, 0
    %s72 = sadd.s32 %s71, 1
    %s73 = scalar_select %p70, %s71, %s72
    %p76 = pneg %p70
    %p77 = scmp.eq.s32.totalorder %s9, 23
    %p78 = por %p76, %p77
    %p79 = scmp.ne.s32.totalorder %s71, %s74
    %p80 = scmp.eq.s32.totalorder %s9, 0
    %p81 = por %p79, %p80
    %p82 = scmp.ne.s32.totalorder %s71, %s74
    %p83 = scmp.eq.s32.totalorder %s14, 23
    %p84 = por %p82, %p83
    %p85 = scmp.ne.s32.totalorder %s74, %s75
    %p86 = scmp.eq.s32.totalorder %s14, 0
    %p87 = por %p85, %p86
    %p88 = scmp.ne.s32.totalorder %s74, %s75
    %p89 = scmp.eq.s32.totalorder %s15, 23
    %p90 = por %p88, %p89
    %p92 = scmp.ne.s32.totalorder %s75, %s91
    %p93 = scmp.eq.s32.totalorder %s15, 0
    %p94 = por %p92, %p93
    %s95 = ssub.s32 %s9, %s16
    %p96 = scmp.eq.s32.totalorder %s95, 0
    %s98 = sadd.s32 %s97, 1
    %s99 = scalar_select %p96, %s97, %s98
    %p102 = pneg %p96
    %p103 = scmp.eq.s32.totalorder %s9, 23
    %p104 = por %p102, %p103
    %p105 = scmp.ne.s32.totalorder %s97, %s100
    %p106 = scmp.eq.s32.totalorder %s9, 0
    %p107 = por %p105, %p106
    %p108 = scmp.ne.s32.totalorder %s97, %s100
    %p109 = scmp.eq.s32.totalorder %s14, 23
    %p110 = por %p108, %p109
    %p111 = scmp.ne.s32.totalorder %s100, %s101
    %p112 = scmp.eq.s32.totalorder %s14, 0
    %p113 = por %p111, %p112
    %p114 = scmp.ne.s32.totalorder %s100, %s101
    %p115 = scmp.eq.s32.totalorder %s15, 23
    %p116 = por %p114, %p115
    %p118 = scmp.ne.s32.totalorder %s101, %s117
    %p119 = scmp.eq.s32.totalorder %s15, 0
    %p120 = por %p118, %p119
    %p121 = scmp.le.s32.totalorder 1, %s9
    %p122 = scmp.lt.s32.totalorder %s9, 25
    %p123 = pnand %p121, %p122
    %p124 = pneg %p123
    // Predicated region
    $region9: #{conv2d_tiled.1} parent=5 // pred_check
      _
    $region10: #{conv2d_tiled.1} parent=5 // pred_check_branch
      %126 = sbr.rel (%p123) target = $region12
    $region11: #{conv2d_tiled.1} parent=5 // pred_region
      %s127 = ssub.s32 %s9, 1
    $region12: #{conv2d_tiled.1} parent=5 // pred_fallthru
      _
    %p128 = scmp.lt.s32.totalorder %s9, 24
    // Predicated region
    $region13: #{conv2d_tiled.1} parent=5 // pred_check
      %p129 = pneg %p128
    $region14: #{conv2d_tiled.1} parent=5 // pred_check_branch
      %131 = sbr.rel (%p129) target = $region16
    $region15: #{conv2d_tiled.1} parent=5 // pred_region
      // Predicated region
      $region17: #{conv2d_tiled.1} parent=15 // pred_check
        %p132 = pneg %p29
      $region18: #{conv2d_tiled.1} parent=15 // pred_check_branch
        %134 = sbr.rel (%p132) target = $region20
      $region19: #{conv2d_tiled.1} parent=15 // pred_region
        %p135 = scmp.lt.s32.totalorder %s9, 23
        %s136 = scalar_select %p135, %s9, 23
        %s137 = smul.addr %s136, 40
        %s138 = smul.addr %s137, 8
        %s139 = scalar_lea.vmem %s0, %s138
      $region20: #{conv2d_tiled.1} parent=15 // pred_fallthru
        _
      // Predicated region
      $region21: #{conv2d_tiled.1} parent=15 // pred_check
        %p140 = pneg %p55
      $region22: #{conv2d_tiled.1} parent=15 // pred_check_branch
        %142 = sbr.rel (%p140) target = $region24
      $region23: #{conv2d_tiled.1} parent=15 // pred_region
        %p143 = scmp.lt.s32.totalorder %s9, 23
        %s144 = scalar_select %p143, %s9, 23
        %s145 = smul.addr %s144, 2
        %s146 = smul.addr %s145, 8
        %s147 = scalar_lea.vmem %s1, %s146
      $region24: #{conv2d_tiled.1} parent=15 // pred_fallthru
        _
      // Predicated region
      $region25: #{conv2d_tiled.1} parent=15 // pred_check
        %p148 = pneg %p81
      $region26: #{conv2d_tiled.1} parent=15 // pred_check_branch
        %150 = sbr.rel (%p148) target = $region28
      $region27: #{conv2d_tiled.1} parent=15 // pred_region
        %p151 = scmp.lt.s32.totalorder %s9, 23
        %s152 = scalar_select %p151, %s9, 23
        %s153 = smul.addr %s152, 2
        %s154 = smul.addr %s153, 8
        %s155 = scalar_lea.vmem %s2, %s154
      $region28: #{conv2d_tiled.1} parent=15 // pred_fallthru
        _
    $region16: #{conv2d_tiled.1} parent=5 // pred_fallthru
      _
    %p156 = scmp.le.s32.totalorder 1, %s9
    %p157 = scmp.lt.s32.totalorder %s9, 25
    %p158 = pnand %p156, %p157
    %p159 = pneg %p158
    // Predicated region
    $region29: #{conv2d_tiled.1} parent=5 // pred_check
      _
    $region30: #{conv2d_tiled.1} parent=5 // pred_check_branch
      %161 = sbr.rel (%p158) target = $region32
    $region31: #{conv2d_tiled.1} parent=5 // pred_region
      %s162 = ssub.s32 %s9, 1
      %p163 = scmp.lt.s32.totalorder %s14, 23
      %s164 = scalar_select %p163, %s14, 23
      %s165 = smul.addr %s164, 40
      %s166 = smul.addr %s165, 8
      %s167 = scalar_lea.vmem %s0, %s166
      %p168 = pneg %p35
      %p169 = pneg %p32
      %p170 = scmp.lt.s32.totalorder %s14, 23
      %s171 = scalar_select %p170, %s14, 23
      %s172 = smul.addr %s171, 2
      %s173 = smul.addr %s172, 8
      %s174 = scalar_lea.vmem %s1, %s173
      %p175 = pneg %p61
      %p176 = pneg %p58
      %p177 = scmp.lt.s32.totalorder %s14, 23
      %s178 = scalar_select %p177, %s14, 23
      %s179 = smul.addr %s178, 2
      %s180 = smul.addr %s179, 8
      %s181 = scalar_lea.vmem %s2, %s180
      %p182 = pneg %p87
      %p183 = pneg %p84
      %p184 = pneg %p113
      %p185 = pneg %p110
      %p186 = scmp.lt.s32.totalorder %s14, 23
      %s187 = scalar_select %p186, %s14, 23
      %s188 = smul.addr %s187, 8
      %s189 = smul.addr %s188, 8
      %s190 = scalar_lea.vmem %s3, %s189
      %p191 = scmp.lt.s32.totalorder %s14, 23
      %s192 = scalar_select %p191, %s14, 23
      %s193 = smul.addr %s192, 40
      %s194 = smul.addr %s193, 8
      %s195 = scalar_lea.vmem %s0, %s194
      %p196 = scmp.lt.s32.totalorder %s14, 23
      %s197 = scalar_select %p196, %s14, 23
      %s198 = smul.addr %s197, 2
      %s199 = smul.addr %s198, 8
      %s200 = scalar_lea.vmem %s1, %s199
      %p201 = scmp.lt.s32.totalorder %s14, 23
      %s202 = scalar_select %p201, %s14, 23
      %s203 = smul.addr %s202, 2
      %s204 = smul.addr %s203, 8
      %s205 = scalar_lea.vmem %s2, %s204
      %p206 = scmp.lt.s32.totalorder %s14, 23
      %s207 = scalar_select %p206, %s14, 23
      %s208 = smul.addr %s207, 8
      %s209 = smul.addr %s208, 8
      %s210 = scalar_lea.vmem %s3, %s209
      %v211 = vld [vmem:[%s200] sm:$0xff]
      %v212 = vld [vmem:[%s200 + $0x8] sm:$0xf]
      %v213 = vld [vmem:[%s195] sm:$0xff]
      %v214 = vld [vmem:[%s195 + $0x8] sm:$0xff]
      %v215 = vld [vmem:[%s195 + $0x10] sm:$0xff]
      %v216 = vld [vmem:[%s195 + $0x18] sm:$0xff]
      %v217 = vld [vmem:[%s195 + $0x20] sm:$0xff]
      %v218 = vld [vmem:[%s195 + $0x28] sm:$0xff]
      %v219 = vld [vmem:[%s195 + $0x30] sm:$0xff]
      %v220 = vld [vmem:[%s195 + $0x38] sm:$0xff]
      %v221 = vld [vmem:[%s195 + $0x40] sm:$0xff]
      %v222 = vld [vmem:[%s195 + $0x48] sm:$0xff]
      %v223 = vld [vmem:[%s195 + $0x50] sm:$0xff]
      %v224 = vld [vmem:[%s195 + $0x58] sm:$0xff]
      %v225 = vld [vmem:[%s195 + $0x60] sm:$0xff]
      %v226 = vld [vmem:[%s195 + $0x68] sm:$0xff]
      %v227 = vld [vmem:[%s195 + $0x70] sm:$0xff]
      %v228 = vld [vmem:[%s195 + $0x78] sm:$0xff]
      %v229 = vld [vmem:[%s195 + $0x80] sm:$0xff]
      %v230 = vld [vmem:[%s195 + $0x88] sm:$0xff]
      %v231 = vld [vmem:[%s195 + $0x90] sm:$0xff]
      %v232 = vld [vmem:[%s195 + $0x98] sm:$0xff]
      %v233 = vld [vmem:[%s195 + $0xa0] sm:$0xff]
      %v234 = vld [vmem:[%s195 + $0xa8] sm:$0xff]
      %v235 = vld [vmem:[%s195 + $0xb0] sm:$0xff]
      %v236 = vld [vmem:[%s195 + $0xb8] sm:$0xff]
      %v237 = vld [vmem:[%s195 + $0xc0] sm:$0xff]
      %v238 = vld [vmem:[%s195 + $0xc8] sm:$0xff]
      %v239 = vld [vmem:[%s195 + $0xd0] sm:$0xff]
      %v240 = vld [vmem:[%s195 + $0xd8] sm:$0xff]
      %v241 = vld [vmem:[%s195 + $0xe0] sm:$0xff]
      %v242 = vld [vmem:[%s195 + $0xe8] sm:$0xff]
      %v243 = vld [vmem:[%s195 + $0xf0] sm:$0xff]
      %v244 = vld [vmem:[%s195 + $0xf8] sm:$0xff]
      %v245 = vld [vmem:[%s195 + $0x100] sm:$0xff]
      %v246 = vld [vmem:[%s195 + $0x108] sm:$0xff]
      %v247 = vld [vmem:[%s195 + $0x110] sm:$0xff]
      %v248 = vld [vmem:[%s195 + $0x118] sm:$0xff]
      %v249 = vld [vmem:[%s195 + $0x120] sm:$0x7]
      %v250 = vld [vmem:[%s195 + $0x128] sm:$0x7]
      %v251 = vld [vmem:[%s195 + $0x130] sm:$0x7]
      %v252 = vld [vmem:[%s195 + $0x138] sm:$0x7]
      %v253 = vld [vmem:[%s205] sm:$0xff]
      %v254 = vld [vmem:[%s205 + $0x8] sm:$0xf]
      %256 = vset.pattern.permute.xlu0 0
      %257 = vperm.xlu0 %256, %v253
      %v258 = vpop.permute.xlu0 %257
      %261 = vset.pattern.permute.xlu0 0
      %262 = vperm.xlu0 %261, %v254
      %v263 = vpop.permute.xlu0 %262
      %vm265 = vcmask 613376
      %v267 = vsel %vm265, %v211, 0
      %v270 = vsel %vm265, %v212, 0
      %vm272 = vcmask 1042432
      %v274 = vsel %vm272, %v249, 0
      %v277 = vsel %vm272, %v250, 0
      %v280 = vsel %vm272, %v251, 0
      %v283 = vsel %vm272, %v252, 0
      %285 = vmatprep.subr.mxu0 %v214
      %286 = vmatpush1.msra.mxu0 %v213
      %287 = vmatprep.subr.mxu0 %v218
      %288 = vmatpush1.msra.mxu0 %v217
      %289 = vmatprep.subr.mxu0 %v222
      %290 = vmatpush1.msra.mxu0 %v221
      %291 = vmatprep.subr.mxu0 %v226
      %292 = vmatpush1.msra.mxu0 %v225
      %293 = vmatprep.subr.mxu0 %v230
      %294 = vmatpush1.msra.mxu0 %v229
      %295 = vmatprep.subr.mxu0 %v234
      %296 = vmatpush1.msra.mxu0 %v233
      %297 = vmatprep.subr.mxu0 %v238
      %298 = vmatpush1.msra.mxu0 %v237
      %299 = vmatprep.subr.mxu0 %v242
      %300 = vmatpush1.msra.mxu0 %v241
      %301 = vmatprep.subr.mxu0 %v246
      %302 = vmatpush1.msra.mxu0 %v245
      %303 = vmatprep.subr.mxu0 %v277
      %304 = vmatpush1.msra.mxu0 %v274
      %305 = vmatprep.subr.mxu0 0.0
      %306 = vmatpush1.msra.mxu0 0.0
      %307 = vmatprep.subr.mxu0 0.0
      %308 = vmatpush1.msra.mxu0 0.0
      %309 = vmatprep.subr.mxu0 0.0
      %310 = vmatpush1.msra.mxu0 0.0
      %311 = vmatprep.subr.mxu0 0.0
      %312 = vmatpush1.msra.mxu0 0.0
      %313 = vmatprep.subr.mxu0 0.0
      %314 = vmatpush1.msra.mxu0 0.0
      %315 = vmatprep.subr.mxu0 0.0
      %316 = vmatpush1.msra.mxu0 0.0
      %317 = vmatprep.subr.mxu0 0.0
      %318 = vmatpush1.msra.mxu0 0.0
      %319 = vmatprep.subr.mxu0 0.0
      %320 = vmatpush1.msra.mxu0 0.0
      %321 = vmatprep.subr.mxu0 0.0
      %322 = vmatpush1.msra.mxu0 0.0
      %323 = vmatprep.subr.mxu0 0.0
      %324 = vmatpush1.msra.mxu0 0.0
      %325 = vmatprep.subr.mxu0 0.0
      %326 = vmatpush1.msra.mxu0 0.0
      %327 = vmatprep.subr.mxu0 0.0
      %328 = vmatpush1.msra.mxu0 0.0
      %329 = vmatprep.subr.mxu0 0.0
      %330 = vmatpush1.msra.mxu0 0.0
      %331 = vmatprep.subr.mxu0 0.0
      %332 = vmatpush1.msra.mxu0 0.0
      %333 = vmatprep.subr.mxu0 0.0
      %334 = vmatpush1.msra.mxu0 0.0
      %335 = vmatprep.subr.mxu0 0.0
      %336 = vmatpush1.msra.mxu0 0.0
      %337 = vmatprep.subr.mxu0 0.0
      %338 = vmatpush1.msra.mxu0 0.0
      %339 = vmatprep.subr.mxu0 0.0
      %340 = vmatpush1.msra.mxu0 0.0
      %341 = vmatprep.subr.mxu0 0.0
      %342 = vmatpush1.msra.mxu0 0.0
      %343 = vmatprep.subr.mxu0 0.0
      %344 = vmatpush1.msra.mxu0 0.0
      %345 = vmatprep.subr.mxu0 0.0
      %346 = vmatpush1.msra.mxu0 0.0
      %347 = vmatprep.subr.mxu0 0.0
      %348 = vmatpush1.msra.mxu0 0.0
      %349 = vmatprep.mubr.f32.mxu0 0.0
      %350 = vmatmul.mubr.f32.gmra.mrb[0].mxu0 %v267
      %v351 = vpop.f32.mrb[0].mxu0
      %v352 = vadd.f32 %v258, %v351
      %v353 = vpop.f32.mrb[0].mxu0
      %v354 = vadd.f32 %v258, %v353
      %355 = vmatprep.mubr.f32.mxu0 0.0
      %356 = vmatmul.mubr.f32.gmra.mrb[0].mxu0 %v270
      %v357 = vpop.f32.mrb[0].mxu0
      %v358 = vadd.f32 %v263, %v357
      %v359 = vpop.f32.mrb[0].mxu0
      %v360 = vadd.f32 %v263, %v359
      %361 = vdwg.mxu0
      %362 = vmatprep.subr.mxu0 %v216
      %363 = vmatpush1.msra.mxu0 %v215
      %364 = vmatprep.subr.mxu0 %v220
      %365 = vmatpush1.msra.mxu0 %v219
      %366 = vmatprep.subr.mxu0 %v224
      %367 = vmatpush1.msra.mxu0 %v223
      %368 = vmatprep.subr.mxu0 %v228
      %369 = vmatpush1.msra.mxu0 %v227
      %370 = vmatprep.subr.mxu0 %v232
      %371 = vmatpush1.msra.mxu0 %v231
      %372 = vmatprep.subr.mxu0 %v236
      %373 = vmatpush1.msra.mxu0 %v235
      %374 = vmatprep.subr.mxu0 %v240
      %375 = vmatpush1.msra.mxu0 %v239
      %376 = vmatprep.subr.mxu0 %v244
      %377 = vmatpush1.msra.mxu0 %v243
      %378 = vmatprep.subr.mxu0 %v248
      %379 = vmatpush1.msra.mxu0 %v247
      %380 = vmatprep.subr.mxu0 %v283
      %381 = vmatpush1.msra.mxu0 %v280
      %382 = vmatprep.subr.mxu0 0.0
      %383 = vmatpush1.msra.mxu0 0.0
      %384 = vmatprep.subr.mxu0 0.0
      %385 = vmatpush1.msra.mxu0 0.0
      %386 = vmatprep.subr.mxu0 0.0
      %387 = vmatpush1.msra.mxu0 0.0
      %388 = vmatprep.subr.mxu0 0.0
      %389 = vmatpush1.msra.mxu0 0.0
      %390 = vmatprep.subr.mxu0 0.0
      %391 = vmatpush1.msra.mxu0 0.0
      %392 = vmatprep.subr.mxu0 0.0
      %393 = vmatpush1.msra.mxu0 0.0
      %394 = vmatprep.subr.mxu0 0.0
      %395 = vmatpush1.msra.mxu0 0.0
      %396 = vmatprep.subr.mxu0 0.0
      %397 = vmatpush1.msra.mxu0 0.0
      %398 = vmatprep.subr.mxu0 0.0
      %399 = vmatpush1.msra.mxu0 0.0
      %400 = vmatprep.subr.mxu0 0.0
      %401 = vmatpush1.msra.mxu0 0.0
      %402 = vmatprep.subr.mxu0 0.0
      %403 = vmatpush1.msra.mxu0 0.0
      %404 = vmatprep.subr.mxu0 0.0
      %405 = vmatpush1.msra.mxu0 0.0
      %406 = vmatprep.subr.mxu0 0.0
      %407 = vmatpush1.msra.mxu0 0.0
      %408 = vmatprep.subr.mxu0 0.0
      %409 = vmatpush1.msra.mxu0 0.0
      %410 = vmatprep.subr.mxu0 0.0
      %411 = vmatpush1.msra.mxu0 0.0
      %412 = vmatprep.subr.mxu0 0.0
      %413 = vmatpush1.msra.mxu0 0.0
      %414 = vmatprep.subr.mxu0 0.0
      %415 = vmatpush1.msra.mxu0 0.0
      %416 = vmatprep.subr.mxu0 0.0
      %417 = vmatpush1.msra.mxu0 0.0
      %418 = vmatprep.subr.mxu0 0.0
      %419 = vmatpush1.msra.mxu0 0.0
      %420 = vmatprep.subr.mxu0 0.0
      %421 = vmatpush1.msra.mxu0 0.0
      %422 = vmatprep.subr.mxu0 0.0
      %423 = vmatpush1.msra.mxu0 0.0
      %424 = vmatprep.subr.mxu0 0.0
      %425 = vmatpush1.msra.mxu0 0.0
      %426 = vmatprep.mubr.f32.mxu0 0.0
      %427 = vmatmul.mubr.f32.gmra.mrb[0].mxu0 %v267
      %v428 = vpop.f32.mrb[0].mxu0
      %v429 = vadd.f32 %v258, %v428
      %v430 = vpop.f32.mrb[0].mxu0
      %v431 = vadd.f32 %v258, %v430
      %432 = vmatprep.mubr.f32.mxu0 0.0
      %433 = vmatmul.mubr.f32.gmra.mrb[0].mxu0 %v270
      %v434 = vpop.f32.mrb[0].mxu0
      %v435 = vadd.f32 %v263, %v434
      %v436 = vpop.f32.mrb[0].mxu0
      %v437 = vadd.f32 %v263, %v436
      %438 = vdwg.mxu0
      %vm439 = vcmp.ge.f32.partialorder %v352, 0.0
      %vm440 = vcmp.ge.f32.partialorder %v354, 0.0
      %vm441 = vcmp.ge.f32.partialorder %v429, 0.0
      %vm442 = vcmp.ge.f32.partialorder %v431, 0.0
      %vm443 = vcmp.ge.f32.partialorder %v358, 0.0
      %vm444 = vcmp.ge.f32.partialorder %v360, 0.0
      %vm445 = vcmp.ge.f32.partialorder %v435, 0.0
      %vm446 = vcmp.ge.f32.partialorder %v437, 0.0
      %v447 = vmul.f32 %v352, 0.2
      %v448 = vmul.f32 %v354, 0.2
      %v449 = vmul.f32 %v429, 0.2
      %v450 = vmul.f32 %v431, 0.2
      %v451 = vmul.f32 %v358, 0.2
      %v452 = vmul.f32 %v360, 0.2
      %v453 = vmul.f32 %v435, 0.2
      %v454 = vmul.f32 %v437, 0.2
      %v455 = vsel %vm439, %v352, %v447
      %v456 = vsel %vm440, %v354, %v448
      %v457 = vsel %vm441, %v429, %v449
      %v458 = vsel %vm442, %v431, %v450
      %v459 = vsel %vm443, %v358, %v451
      %v460 = vsel %vm444, %v360, %v452
      %v461 = vsel %vm445, %v435, %v453
      %v462 = vsel %vm446, %v437, %v454
      %463 = vst [vmem:[%s210] sm:$0xff] %v455
      %464 = vst [vmem:[%s210 + $0x8] sm:$0xff] %v456
      %465 = vst [vmem:[%s210 + $0x10] sm:$0xff] %v457
      %466 = vst [vmem:[%s210 + $0x18] sm:$0xff] %v458
      %467 = vst [vmem:[%s210 + $0x20] sm:$0xf] %v459
      %468 = vst [vmem:[%s210 + $0x28] sm:$0xf] %v460
      %469 = vst [vmem:[%s210 + $0x30] sm:$0xf] %v461
      %470 = vst [vmem:[%s210 + $0x38] sm:$0xf] %v462
      %p471 = scmp.lt.s32.totalorder %s14, 23
      %s472 = scalar_select %p471, %s14, 23
      %s473 = smul.addr %s472, 8
      %s474 = smul.addr %s473, 8
      %s475 = scalar_lea.vmem %s3, %s474
      // Predicated region
      $region33: #{conv2d_tiled.1} parent=31 // pred_check
        %p476 = pneg %p110
      $region34: #{conv2d_tiled.1} parent=31 // pred_check_branch
        %478 = sbr.rel (%p476) target = $region36
      $region35: #{conv2d_tiled.1} parent=31 // pred_region
        _
      $region36: #{conv2d_tiled.1} parent=31 // pred_fallthru
        _
    $region32: #{conv2d_tiled.1} parent=5 // pred_fallthru
      _
    %p479 = scmp.le.s32.totalorder 2, %s9
    // Predicated region
    $region37: #{conv2d_tiled.1} parent=5 // pred_check
      %p480 = pneg %p479
    $region38: #{conv2d_tiled.1} parent=5 // pred_check_branch
      %482 = sbr.rel (%p480) target = $region40
    $region39: #{conv2d_tiled.1} parent=5 // pred_region
      %s483 = ssub.s32 %s9, 2
      // Predicated region
      $region41: #{conv2d_tiled.1} parent=39 // pred_check
        %p484 = pneg %p116
      $region42: #{conv2d_tiled.1} parent=39 // pred_check_branch
        %486 = sbr.rel (%p484) target = $region44
      $region43: #{conv2d_tiled.1} parent=39 // pred_region
        %p487 = scmp.lt.s32.totalorder %s15, 23
        %s488 = scalar_select %p487, %s15, 23
        %s489 = smul.addr %s488, 8
        %s490 = smul.addr %s489, 8
        %s491 = scalar_lea.vmem %s3, %s490
      $region44: #{conv2d_tiled.1} parent=39 // pred_fallthru
        _
    $region40: #{conv2d_tiled.1} parent=5 // pred_fallthru
      _
  $region6: #{conv2d_tiled.1} parent=0 // loop_footer
    %s13 = sadd.s32 1, %s9
  $region7: #{conv2d_tiled.1} parent=0 // loop_footer_branch
    %8 = sbr.rel target = $region3
  $region8: #{conv2d_tiled.1} parent=0 // loop_exit
    _

</llo_original>
